<compile_context>
chip_gen: v6e
topology: v6e:2x2x1
jax: 0.10.0
libtpu: 0.0.40
codegen_flags: <defaults>
</compile_context>

<pallas_src>
import functools

import jax
import jax.numpy as jnp
from jax import lax
from jax.experimental import pallas as pl
from jax.experimental.pallas import tpu as pltpu

_LANE = 128


# ----------------------------------------------------------------------------
# Kernels
# ----------------------------------------------------------------------------
def _erelu_eval_kernel(x_ref, o_ref):
    # Eval mode: k == 1  ->  ReLU.  maximum = 1 VALU op (vs compare+select).
    x = x_ref[...]
    o_ref[...] = jnp.maximum(x, jnp.zeros_like(x))


def _erelu_train_kernel(seed_ref, x_ref, o_ref, *, eps, block_rows, lanes):
    # Training mode: k ~ Uniform(1 - eps, 1 + eps), y = k * max(x, 0).
    #
    # Counter-based hash PRNG (portable: plain jnp/lax ops only).  Each element
    # hashes (seed, global flat index) -> 32 random bits -> uniform k.
    shape = x_ref.shape
    row = lax.broadcasted_iota(jnp.int32, shape, 0) + pl.program_id(0) * block_rows
    col = lax.broadcasted_iota(jnp.int32, shape, 1)
    idx = lax.bitcast_convert_type(row * lanes + col, jnp.uint32)

    # Mix the seed in with a golden-ratio multiply, then a lowbias32 finisher.
    s = seed_ref[0].astype(jnp.uint32) * jnp.uint32(0x9E3779B9)
    h = idx ^ s
    h = h ^ (h >> 16)
    h = h * jnp.uint32(0x7FEB352D)
    h = h ^ (h >> 15)
    h = h * jnp.uint32(0x846CA68B)
    h = h ^ (h >> 16)

    # Mantissa trick: random bits -> f32 uniform in [1, 2).  Folded affine:
    #   k = (1 - 3*eps) + 2*eps * [1, 2)  ==  Uniform(1 - eps, 1 + eps)
    r12 = lax.bitcast_convert_type((h >> 9) | jnp.uint32(0x3F800000), jnp.float32)
    k = jnp.float32(1.0 - 3.0 * eps) + jnp.float32(2.0 * eps) * r12

    # Compute in f32, cast once at the store (matters for bf16 on v5e).
    xf = x_ref[...].astype(jnp.float32)
    o_ref[...] = (k * jnp.maximum(xf, jnp.float32(0.0))).astype(o_ref.dtype)
    # TODO(synk): for 16-bit dtypes one uint32 hash could feed two k values
    # (halving PRNG work per byte) — v7x micro-opt, not needed for f32.


# ----------------------------------------------------------------------------
# Layout / budget selection
# ----------------------------------------------------------------------------
def _choose_layout(n, itemsize):
    """Pick (lanes, rows, block_rows) for a lane-dense slab; n % 128 == 0."""
    lanes = _LANE
    for c in (1024, 512, 256, 128):
        if n % c == 0:
            lanes = c
            break
    rows = n // lanes

    # Target ~8 MiB blocks (in + out, double-buffered => <= 32 MiB VMEM).
    target_rows = max(8, (8 * 1024 * 1024) // (lanes * itemsize))
    target_rows = (target_rows // 8) * 8

    if rows <= 8:
        return lanes, rows, rows  # single tiny block; full rows dim is legal

    # >= 2 grid steps whenever possible so v7x's 2 TensorCores both stream.
    half_rows = pl.cdiv(pl.cdiv(rows, 2), 8) * 8
    block_rows = max(8, min(target_rows, half_rows))
    return lanes, rows, block_rows


def _vmem_limit_bytes():
    try:
        cap = int(pltpu.get_tpu_info().vmem_capacity_bytes)
    except Exception:
        return 64 * 1024 * 1024  # safe default (fits every generation)
    # ~3/4 of physical, capped: ~48 MiB on v7x (64 MiB), ~96-100 MiB on v5e/v6e.
    return int(min(max(cap * 3 // 4, 32 * 1024 * 1024), 100 * 1024 * 1024))


# ----------------------------------------------------------------------------
# Wrapper
# ----------------------------------------------------------------------------
def erelu(x, *, eps=0.4, training=False, seed=0):
    """EReLU forward. Matches c_EReLU.forward semantics."""
    orig_shape = x.shape
    dtype = x.dtype
    n = x.size
    if n == 0:
        return x

    if n % _LANE == 0:
        lanes, rows, block_rows = _choose_layout(n, jnp.dtype(dtype).itemsize)
    else:
        # Ragged size: single full-array block (full dims bypass the (8,128)
        # rule).  Pure reshape, no HBM pad/slice round-trip.
        lanes, rows, block_rows = n, 1, 1
        # TODO(synk): very large non-128-multiple sizes would want an in-kernel
        # masked tail instead of one giant block.

    slab = x.reshape(rows, lanes)
    grid = (pl.cdiv(rows, block_rows),)
    block = (block_rows, lanes)
    out_shape = jax.ShapeDtypeStruct((rows, lanes), dtype)
    compiler_params = pltpu.CompilerParams(
        dimension_semantics=("parallel",),       # megacore-shardable
        vmem_limit_bytes=_vmem_limit_bytes(),
    )

    if training:
        seed_arr = jnp.asarray([seed], dtype=jnp.int32)
        out = pl.pallas_call(
            functools.partial(_erelu_train_kernel, eps=float(eps),
                              block_rows=block_rows, lanes=lanes),
            out_shape=out_shape,
            grid_spec=pltpu.PrefetchScalarGridSpec(
                num_scalar_prefetch=1,
                grid=grid,
                in_specs=[pl.BlockSpec(block, lambda i, seed_ref: (i, 0))],
                out_specs=pl.BlockSpec(block, lambda i, seed_ref: (i, 0)),
            ),
            compiler_params=compiler_params,
        )(seed_arr, slab)
    else:
        out = pl.pallas_call(
            _erelu_eval_kernel,
            out_shape=out_shape,
            grid_spec=pltpu.PrefetchScalarGridSpec(
                num_scalar_prefetch=0,
                grid=grid,
                in_specs=[pl.BlockSpec(block, lambda i: (i, 0))],
                out_specs=pl.BlockSpec(block, lambda i: (i, 0)),
            ),
            compiler_params=compiler_params,
        )(slab)

    return out.reshape(orig_shape)


# TODO(synk): only the forward pass is implemented; the custom autograd backward
# (grad = where(x < 0, 0, k * grad_out)) would need a separate kernel + custom_vjp.

if __name__ == "__main__":
    key = jax.random.PRNGKey(0)
    # NCHW input consistent with a VGG activation: (2, 4, 16, 16)
    x = jax.random.normal(key, (2, 4, 16, 16), dtype=jnp.float32)
    eps = 0.4

    # --- eval mode: identical to ReLU ---
    y_eval = jax.block_until_ready(erelu(x, eps=eps, training=False))
    ref = jnp.where(x < 0, jnp.zeros_like(x), x)
    assert jnp.allclose(y_eval, ref), "eval-mode mismatch vs ReLU reference"

    # --- training mode: positives scaled by k in [1-eps, 1+eps], negatives zeroed ---
    y_tr = jax.block_until_ready(erelu(x, eps=eps, training=True, seed=123))
    pos = x > 0
    ratio = jnp.where(pos, y_tr / jnp.where(pos, x, jnp.ones_like(x)), 1.0)
    assert bool(jnp.all(jnp.where(x < 0, y_tr == 0, True))), "negatives not zeroed"
    assert bool(jnp.all(jnp.where(
        pos,
        (ratio >= 1.0 - eps - 1e-5) & (ratio <= 1.0 + eps + 1e-5),
        True))), "training scale outside [1-eps, 1+eps]"

    # --- determinism: same seed -> same draw ---
    y_tr2 = jax.block_until_ready(erelu(x, eps=eps, training=True, seed=123))
    assert jnp.array_equal(y_tr, y_tr2), "training mode not deterministic for fixed seed"

    print("KERNEL_OK")
</pallas_src>

<mosaic_0001>
module attributes {stable_mosaic.version = 11 : i64} {
  func.func @_erelu_eval_kernel(%arg0: i32, %arg1: memref<2x1024xf32, #tpu.memory_space<vmem>>, %arg2: memref<2x1024xf32, #tpu.memory_space<vmem>>) attributes {dimension_semantics = [#tpu.dimension_semantics<parallel>], iteration_bounds = array<i64: 1>, scalar_prefetch = 0 : i64, scratch_operands = 0 : i64, tpu.core_type = #tpu.core_type<tc>, window_params = [{transform_indices = @transform_0, window_bounds = array<i64: 2, 1024>}, {transform_indices = @transform_1, window_bounds = array<i64: 2, 1024>}]} {
    %c0 = arith.constant 0 : index
    %c0_0 = arith.constant 0 : index
    %0 = vector.load %arg1[%c0, %c0_0] : memref<2x1024xf32, #tpu.memory_space<vmem>>, vector<2x1024xf32>
    %cst = arith.constant 0.000000e+00 : f32
    %1 = vector.broadcast %cst : f32 to vector<2x1024xf32>
    %2 = arith.maximumf %0, %1 : vector<2x1024xf32>
    %c0_1 = arith.constant 0 : index
    %c0_2 = arith.constant 0 : index
    %3 = vector.load %arg2[%c0_1, %c0_2] : memref<2x1024xf32, #tpu.memory_space<vmem>>, vector<2x1024xf32>
    tpu.vector_store %arg2[%c0_1, %c0_2], %2 {strides = array<i32>} : memref<2x1024xf32, #tpu.memory_space<vmem>>, vector<2x1024xf32>,
    return
  }
  func.func @transform_0(%arg0: i32) -> (i32, i32) {
    %c0_i32 = arith.constant 0 : i32
    %c0_i32_0 = arith.constant 0 : i32
    return %arg0, %c0_i32 : i32, i32
  }
  func.func @transform_1(%arg0: i32) -> (i32, i32) {
    %c0_i32 = arith.constant 0 : i32
    %c0_i32_0 = arith.constant 0 : i32
    return %arg0, %c0_i32 : i32, i32
  }
}

</mosaic_0001>

<llo_original>
// kernel: tpu_custom_call.1
$region0: #{tpu_custom_call.1}
  #allocation0 [shape = 'u32[]', space=smem, size = 0x4, offset = 0x4, fixed_abs, tag = 'smem constant byte address 0x4 - core index']
  #allocation1 [shape = 'u32[144,128]{1,0:T(1,128)}', space=vmem, size = 0x12000, scoped, tag = 'internal scratch']
  %s0 = inlined_call_operand.hbm [shape: f32[2,1024], index: 0, kind: input, shape index: {}]
  %s1 = inlined_call_operand.hbm [shape: f32[2,1024], index: 1, kind: output, shape index: {}]
  %s2 = sld [smem:[#allocation0]]
  $region18: #{tpu_custom_call.1} parent=0
    _
  %s4 = ssub.s32 1, %s2
  %s5 = scalar_select 0, %s4, %s2
  $region1: #{tpu_custom_call.1} parent=0
    #allocation2 [shape = 'u8[8192]{0}', space=vmem, size = 0x2000, scoped, tag = 'input window, operand 0, single buffered']
    #allocation3 [shape = 's32[1]{0}', space=sflag, size = 0x4, scoped, tag = 'scoped memory for tpu_custom_call.1']
    #allocation4 [shape = 's32[1]{0}', space=sflag, size = 0x4, scoped, tag = 'scoped memory for tpu_custom_call.1']
    #allocation5 [shape = 'u8[8192]{0}', space=vmem, size = 0x2000, scoped, tag = 'output window, operand 0, single buffered']
    %6 = vsyncpa [#allocation3], 0
    %7 = vsyncpa [#allocation4], 0
    // Predicated region
    $region2: #{tpu_custom_call.1} parent=1 // pred_check
      _
    $region3: #{tpu_custom_call.1} parent=1 // pred_check_branch
      %9 = sbr.rel (0) target = $region5
    $region4: #{tpu_custom_call.1} parent=1 // pred_region
      %s11 = ssub.s32 256, 256
      %12 = vsyncadd [#allocation3], %s11
      %s14 = sshll.u32 [#allocation2], 4
      %s15 = int_to_ptr.vmem [resolvable:$true] %s14
      %17 = dma.hbm_to_vmem [thread:$0]  %s0, 256, %s15, [#allocation3]
    $region5: #{tpu_custom_call.1} parent=1 // pred_fallthru
      _
    // Predicated region
    $region6: #{tpu_custom_call.1} parent=1 // pred_check
      _
    $region7: #{tpu_custom_call.1} parent=1 // pred_check_branch
      %19 = sbr.rel (0) target = $region9
    $region8: #{tpu_custom_call.1} parent=1 // pred_region
      %20 = dma.done [#allocation3], 256
    $region9: #{tpu_custom_call.1} parent=1 // pred_fallthru
      _
    %v21 = vld [vmem:[#allocation2] sm:$0xff]
    %v22 = vld [vmem:[#allocation2 + $0x8] sm:$0xff]
    %v23 = vmax.f32 %v21, 0.0
    %v24 = vmax.f32 %v22, 0.0
    %25 = vst [vmem:[#allocation5] sm:$0xff] %v23
    %26 = vst [vmem:[#allocation5 + $0x8] sm:$0xff] %v24
    // Predicated region
    $region10: #{tpu_custom_call.1} parent=1 // pred_check
      _
    $region11: #{tpu_custom_call.1} parent=1 // pred_check_branch
      %28 = sbr.rel (0) target = $region13
    $region12: #{tpu_custom_call.1} parent=1 // pred_region
      %s30 = ssub.s32 256, 256
      %31 = vsyncadd [#allocation4], %s30
      %s33 = sshll.u32 [#allocation5], 4
      %s34 = int_to_ptr.vmem [resolvable:$true] %s33
      %36 = dma.vmem_to_hbm [thread:$0]  %s34, 256, %s1, [#allocation4]
    $region13: #{tpu_custom_call.1} parent=1 // pred_fallthru
      _
    // Predicated region
    $region14: #{tpu_custom_call.1} parent=1 // pred_check
      _
    $region15: #{tpu_custom_call.1} parent=1 // pred_check_branch
      %38 = sbr.rel (0) target = $region17
    $region16: #{tpu_custom_call.1} parent=1 // pred_region
      %39 = dma.done [#allocation4], 256
    $region17: #{tpu_custom_call.1} parent=1 // pred_fallthru
      _
    %40 = vsyncpa [#allocation3], 1
    %41 = vsyncpa [#allocation4], 1

</llo_original>
